<compile_context>
chip_gen: v6e
topology: v6e:2x2x1
jax: 0.10.0
libtpu: 0.0.40
codegen_flags: <defaults>
</compile_context>

<pallas_src>
import math

import jax
import jax.numpy as jnp
from jax import lax
from jax.experimental import pallas as pl
from jax.experimental.pallas import tpu as pltpu

# BipedalWalker-v3: observation_space.shape == (24,), action_space.shape == (4,)
N_OBS = 24
N_ACT = 4
N_IN = N_OBS + N_ACT
HIDDEN = 256

# Per-tile VMEM (double-buffered lane-padded obs/act blocks + f32 h1/h2) stays
# ~5 MiB at 1024, safe under every generation's scoped-VMEM default.
# v6e with big batches can raise this (plus vmem_limit_bytes); keep <= 2048 on
# v7x (64 MiB physical VMEM).
MAX_B_TILE = 1024
# Below this batch size a single grid step is used (per-step overhead ~0.35us
# would dominate a split); above it we guarantee >= 2 steps so v7x's two
# TensorCores both get work.
MIN_SPLIT_B = 512


def _round_up(x, m):
    return ((x + m - 1) // m) * m


def _choose_tiling(B):
    """Return (batch_tile, num_tiles)."""
    if B < MIN_SPLIT_B:
        # Single tile, 8-aligned (sublane).  Last dim of the (1, bt) output
        # block equals the full array dim, so no 128-alignment needed here.
        return _round_up(max(B, 8), 8), 1
    # Balanced tiles, >= 2 of them; 128-aligned so the lane-dense (1, bt)
    # output block satisfies the lane-tiling constraint when it is not the
    # full output width.
    n = max(2, -(-B // MAX_B_TILE))
    bt = min(_round_up(-(-B // n), 128), _round_up(MAX_B_TILE, 128))
    return bt, -(-B // bt)


def _soft_q_kernel(obs_ref, act_ref, w1_ref, b1_ref, w2_ref, b2_ref,
                   w3_ref, b3_ref, out_ref, x_ref):
    """Fused 3-layer MLP on one batch tile (batch ends up on the lane axis).

    h1 = relu([obs|act] @ W1 + b1); h2 = relu(h1 @ W2 + b2);
    q_row = (W3_pad @ h2^T)[0] + b3   -> stored lane-dense as (1, bt).
    """
    # Assemble x = concat([obs, act], axis=1) in VMEM with two masked lane
    # stores (cheap; no HBM round trip) so layer 1 is a single MXU pass.
    x_ref[:, :N_OBS] = obs_ref[...].astype(jnp.float32)
    x_ref[:, N_OBS:] = act_ref[...].astype(jnp.float32)
    x = x_ref[...].astype(jnp.bfloat16)                             # (Bt, 28)

    h1 = jnp.dot(x, w1_ref[...],
                 preferred_element_type=jnp.float32) + b1_ref[...]
    h1 = jnp.maximum(h1, 0.0)                                       # (Bt, 256) f32

    h2 = jnp.dot(h1.astype(jnp.bfloat16), w2_ref[...],
                 preferred_element_type=jnp.float32) + b2_ref[...]
    h2 = jnp.maximum(h2, 0.0)                                       # (Bt, 256) f32

    # Layer 3 with the batch on the lane axis: W3_pad (8,256) contracted with
    # h2 (Bt,256) over the hidden dim (flash-attention "trans_b" pattern) gives
    # a lane-dense (8, Bt) tile whose row 0 is q.  Keeps the store unmasked
    # and full-lane instead of a (Bt, 1) masked strided writeback.
    qs = lax.dot_general(w3_ref[...], h2.astype(jnp.bfloat16),
                         dimension_numbers=(((1,), (1,)), ((), ())),
                         preferred_element_type=jnp.float32)        # (8, Bt)
    out_ref[...] = (qs[0:1, :] + b3_ref[...]).astype(out_ref.dtype)  # (1, Bt)


def soft_q_forward(obs, act, params):
    """obs: (B, n_obs), act: (B, n_act) -> q: (B, 1). obs/act may be f32 or bf16."""
    w1, b1, w2, b2, w3, b3 = params
    B = obs.shape[0]
    bt, n_tiles = _choose_tiling(B)
    Bp = bt * n_tiles

    if bt > B:
        # Tiny batch: a block larger than the array would be needed -> pad the
        # handful of rows (cheap).  For B >= bt the ragged final block is
        # handled by Pallas' bounded block loads: garbage rows only reach
        # output columns >= B, which are sliced off below.
        obs = jnp.pad(obs, ((0, bt - B), (0, 0)))
        act = jnp.pad(act, ((0, bt - B), (0, 0)))

    q_row = pl.pallas_call(
        _soft_q_kernel,
        out_shape=jax.ShapeDtypeStruct((1, Bp), jnp.float32),
        grid=(n_tiles,),
        in_specs=[
            pl.BlockSpec((bt, N_OBS), lambda i: (i, 0)),      # obs  (streamed)
            pl.BlockSpec((bt, N_ACT), lambda i: (i, 0)),      # act  (streamed)
            pl.BlockSpec((N_IN, HIDDEN), lambda i: (0, 0)),   # W1   (resident)
            pl.BlockSpec((1, HIDDEN), lambda i: (0, 0)),      # b1
            pl.BlockSpec((HIDDEN, HIDDEN), lambda i: (0, 0)), # W2
            pl.BlockSpec((1, HIDDEN), lambda i: (0, 0)),      # b2
            pl.BlockSpec((8, HIDDEN), lambda i: (0, 0)),      # W3 (8 rows, row0 real)
            pl.BlockSpec((1, 1), lambda i: (0, 0)),           # b3
        ],
        # Lane-dense output: batch lives on the lane axis of a (1, Bp) array.
        out_specs=pl.BlockSpec((1, bt), lambda i: (0, i)),
        scratch_shapes=[pltpu.VMEM((bt, N_IN), jnp.float32)],  # concat scratch
        compiler_params=pltpu.CompilerParams(
            # v7x: with >=2 grid steps the batch axis shards across both TCs.
            dimension_semantics=("parallel",)),
    )(obs, act, w1, b1, w2, b2, w3, b3)

    return q_row.reshape(Bp, 1)[:B]


def init_params(key):
    """Init mimicking torch.nn.Linear (uniform +/- 1/sqrt(fan_in)).

    Kernel layout: W1 merged (28, 256) = [obs rows | act rows] (cat([x, a])
    order), W2 (256, 256), W3 stored transposed and sublane-padded to (8, 256)
    with the real weights in row 0.  Weights bf16 (MXU path), biases f32.
    """
    def linear(k, fan_in, fan_out):
        kw, kb = jax.random.split(k)
        bound = 1.0 / math.sqrt(fan_in)
        w = jax.random.uniform(kw, (fan_in, fan_out), jnp.float32, -bound, bound)
        b = jax.random.uniform(kb, (1, fan_out), jnp.float32, -bound, bound)
        return w, b

    k1, k2, k3 = jax.random.split(key, 3)
    w1, b1 = linear(k1, N_IN, HIDDEN)
    w2, b2 = linear(k2, HIDDEN, HIDDEN)
    w3, b3 = linear(k3, HIDDEN, 1)

    w3_pad = jnp.zeros((8, HIDDEN), jnp.bfloat16).at[0].set(
        w3[:, 0].astype(jnp.bfloat16))
    return (w1.astype(jnp.bfloat16), b1,
            w2.astype(jnp.bfloat16), b2,
            w3_pad, b3.reshape(1, 1))


def soft_q_ref(obs, act, params):
    """Pure-JAX reference (same bf16-weight / f32-accumulate numerics)."""
    w1, b1, w2, b2, w3_pad, b3 = params
    x = jnp.concatenate([obs, act], axis=1).astype(jnp.bfloat16)
    h1 = jnp.maximum(
        jnp.dot(x, w1, preferred_element_type=jnp.float32) + b1, 0.0)
    h2 = jnp.maximum(
        jnp.dot(h1.astype(jnp.bfloat16), w2,
                preferred_element_type=jnp.float32) + b2, 0.0)
    w3_col = w3_pad[0:1, :].T                                    # (256, 1)
    return jnp.dot(h2.astype(jnp.bfloat16), w3_col,
                   preferred_element_type=jnp.float32) + b3


if __name__ == "__main__":
    key = jax.random.PRNGKey(0)
    kp, ko, ka = jax.random.split(key, 3)
    params = init_params(kp)

    # Small batch: single grid step, lane-dense (1, 8) output block.
    B = 8
    obs = jax.random.normal(ko, (B, N_OBS), jnp.float32)
    act = jax.random.uniform(ka, (B, N_ACT), jnp.float32, -1.0, 1.0)
    q = soft_q_forward(obs, act, params)
    jax.block_until_ready(q)
    assert q.shape == (B, 1), q.shape
    q_ref = soft_q_ref(obs, act, params)
    assert jnp.allclose(q, q_ref, atol=2e-3, rtol=2e-3), (q, q_ref)

    # Ragged multi-tile batch: adaptive tiling (2 tiles of 768, no jnp.pad),
    # partial final input block, multi-step lane-dense writeback.
    B2 = 1500
    ko2, ka2 = jax.random.split(jax.random.PRNGKey(1))
    obs2 = jax.random.normal(ko2, (B2, N_OBS), jnp.float32)
    act2 = jax.random.uniform(ka2, (B2, N_ACT), jnp.float32, -1.0, 1.0)
    q2 = soft_q_forward(obs2, act2, params)
    jax.block_until_ready(q2)
    assert q2.shape == (B2, 1)
    assert jnp.allclose(q2, soft_q_ref(obs2, act2, params), atol=2e-3, rtol=2e-3)

    print("KERNEL_OK")
</pallas_src>

<mosaic_0001>
module attributes {stable_mosaic.version = 11 : i64} {
  func.func @_soft_q_kernel(%arg0: i32, %arg1: memref<8x24xf32, #tpu.memory_space<vmem>>, %arg2: memref<8x4xf32, #tpu.memory_space<vmem>>, %arg3: memref<28x256xbf16, #tpu.memory_space<vmem>>, %arg4: memref<1x256xf32, #tpu.memory_space<vmem>>, %arg5: memref<256x256xbf16, #tpu.memory_space<vmem>>, %arg6: memref<1x256xf32, #tpu.memory_space<vmem>>, %arg7: memref<8x256xbf16, #tpu.memory_space<vmem>>, %arg8: memref<1x1xf32, #tpu.memory_space<vmem>>, %arg9: memref<1x8xf32, #tpu.memory_space<vmem>>, %arg10: memref<8x28xf32, #tpu.memory_space<vmem>>) attributes {dimension_semantics = [#tpu.dimension_semantics<parallel>], iteration_bounds = array<i64: 1>, scalar_prefetch = 0 : i64, scratch_operands = 1 : i64, tpu.core_type = #tpu.core_type<tc>, window_params = [{transform_indices = @transform_0, window_bounds = array<i64: 8, 24>}, {transform_indices = @transform_1, window_bounds = array<i64: 8, 4>}, {pipeline_mode = #tpu.pipeline_mode<synchronous>, transform_indices = @transform_2, window_bounds = array<i64: 28, 256>}, {pipeline_mode = #tpu.pipeline_mode<synchronous>, transform_indices = @transform_3, window_bounds = array<i64: 1, 256>}, {pipeline_mode = #tpu.pipeline_mode<synchronous>, transform_indices = @transform_4, window_bounds = array<i64: 256, 256>}, {pipeline_mode = #tpu.pipeline_mode<synchronous>, transform_indices = @transform_5, window_bounds = array<i64: 1, 256>}, {pipeline_mode = #tpu.pipeline_mode<synchronous>, transform_indices = @transform_6, window_bounds = array<i64: 8, 256>}, {pipeline_mode = #tpu.pipeline_mode<synchronous>, transform_indices = @transform_7, window_bounds = array<i64: 1, 1>}, {transform_indices = @transform_8, window_bounds = array<i64: 1, 8>}]} {
    %c0 = arith.constant 0 : index
    %c0_0 = arith.constant 0 : index
    %0 = vector.load %arg1[%c0, %c0_0] : memref<8x24xf32, #tpu.memory_space<vmem>>, vector<8x24xf32>
    %c0_1 = arith.constant 0 : index
    %c0_2 = arith.constant 0 : index
    %1 = vector.load %arg10[%c0_1, %c0_2] : memref<8x28xf32, #tpu.memory_space<vmem>>, vector<8x24xf32>
    tpu.vector_store %arg10[%c0_1, %c0_2], %0 {strides = array<i32>} : memref<8x28xf32, #tpu.memory_space<vmem>>, vector<8x24xf32>,
    %c0_3 = arith.constant 0 : index
    %c0_4 = arith.constant 0 : index
    %2 = vector.load %arg2[%c0_3, %c0_4] : memref<8x4xf32, #tpu.memory_space<vmem>>, vector<8x4xf32>
    %c0_5 = arith.constant 0 : index
    %c24 = arith.constant 24 : index
    %3 = vector.load %arg10[%c0_5, %c24] : memref<8x28xf32, #tpu.memory_space<vmem>>, vector<8x4xf32>
    tpu.vector_store %arg10[%c0_5, %c24], %2 {strides = array<i32>} : memref<8x28xf32, #tpu.memory_space<vmem>>, vector<8x4xf32>,
    %c0_6 = arith.constant 0 : index
    %c0_7 = arith.constant 0 : index
    %4 = vector.load %arg10[%c0_6, %c0_7] : memref<8x28xf32, #tpu.memory_space<vmem>>, vector<8x28xf32>
    %5 = arith.truncf %4 : vector<8x28xf32> to vector<8x28xbf16>
    %c0_8 = arith.constant 0 : index
    %c0_9 = arith.constant 0 : index
    %6 = vector.load %arg3[%c0_8, %c0_9] : memref<28x256xbf16, #tpu.memory_space<vmem>>, vector<28x256xbf16>
    %cst = arith.constant dense<0.000000e+00> : vector<8x256xf32>
    %7 = tpu.matmul %5, %6, %cst {dimension_numbers = #tpu.dot_dimension_numbers<[1], [0], [0], [1], [0, 0, 1, 1], [], []>} : vector<8x28xbf16>, vector<28x256xbf16>, vector<8x256xf32> -> vector<8x256xf32>
    %c0_10 = arith.constant 0 : index
    %c0_11 = arith.constant 0 : index
    %8 = vector.load %arg4[%c0_10, %c0_11] : memref<1x256xf32, #tpu.memory_space<vmem>>, vector<1x256xf32>
    %9 = vector.broadcast %8 : vector<1x256xf32> to vector<8x256xf32>
    %10 = arith.addf %7, %9 : vector<8x256xf32>
    %cst_12 = arith.constant 0.000000e+00 : f32
    %11 = vector.broadcast %cst_12 : f32 to vector<8x256xf32>
    %12 = arith.maximumf %10, %11 : vector<8x256xf32>
    %13 = arith.truncf %12 : vector<8x256xf32> to vector<8x256xbf16>
    %c0_13 = arith.constant 0 : index
    %c0_14 = arith.constant 0 : index
    %14 = vector.load %arg5[%c0_13, %c0_14] : memref<256x256xbf16, #tpu.memory_space<vmem>>, vector<256x256xbf16>
    %cst_15 = arith.constant dense<0.000000e+00> : vector<8x256xf32>
    %15 = tpu.matmul %13, %14, %cst_15 {dimension_numbers = #tpu.dot_dimension_numbers<[1], [0], [0], [1], [0, 0, 1, 1], [], []>} : vector<8x256xbf16>, vector<256x256xbf16>, vector<8x256xf32> -> vector<8x256xf32>
    %c0_16 = arith.constant 0 : index
    %c0_17 = arith.constant 0 : index
    %16 = vector.load %arg6[%c0_16, %c0_17] : memref<1x256xf32, #tpu.memory_space<vmem>>, vector<1x256xf32>
    %17 = vector.broadcast %16 : vector<1x256xf32> to vector<8x256xf32>
    %18 = arith.addf %15, %17 : vector<8x256xf32>
    %cst_18 = arith.constant 0.000000e+00 : f32
    %19 = vector.broadcast %cst_18 : f32 to vector<8x256xf32>
    %20 = arith.maximumf %18, %19 : vector<8x256xf32>
    %c0_19 = arith.constant 0 : index
    %c0_20 = arith.constant 0 : index
    %21 = vector.load %arg7[%c0_19, %c0_20] : memref<8x256xbf16, #tpu.memory_space<vmem>>, vector<8x256xbf16>
    %22 = arith.truncf %20 : vector<8x256xf32> to vector<8x256xbf16>
    %cst_21 = arith.constant dense<0.000000e+00> : vector<8x8xf32>
    %23 = tpu.matmul %21, %22, %cst_21 {dimension_numbers = #tpu.dot_dimension_numbers<[1], [1], [0], [0], [0, 0, 1, 0], [], []>} : vector<8x256xbf16>, vector<8x256xbf16>, vector<8x8xf32> -> vector<8x8xf32>
    %24 = vector.extract_strided_slice %23 {offsets = [0, 0], sizes = [1, 8], strides = [1, 1]} : vector<8x8xf32> to vector<1x8xf32>
    %c0_22 = arith.constant 0 : index
    %c0_23 = arith.constant 0 : index
    %25 = vector.load %arg8[%c0_22, %c0_23] : memref<1x1xf32, #tpu.memory_space<vmem>>, vector<1x1xf32>
    %26 = vector.broadcast %25 : vector<1x1xf32> to vector<1x8xf32>
    %27 = arith.addf %24, %26 : vector<1x8xf32>
    %c0_24 = arith.constant 0 : index
    %c0_25 = arith.constant 0 : index
    %28 = vector.load %arg9[%c0_24, %c0_25] : memref<1x8xf32, #tpu.memory_space<vmem>>, vector<1x8xf32>
    tpu.vector_store %arg9[%c0_24, %c0_25], %27 {strides = array<i32>} : memref<1x8xf32, #tpu.memory_space<vmem>>, vector<1x8xf32>,
    return
  }
  func.func @transform_0(%arg0: i32) -> (i32, i32) {
    %c0_i32 = arith.constant 0 : i32
    %c0_i32_0 = arith.constant 0 : i32
    return %arg0, %c0_i32 : i32, i32
  }
  func.func @transform_1(%arg0: i32) -> (i32, i32) {
    %c0_i32 = arith.constant 0 : i32
    %c0_i32_0 = arith.constant 0 : i32
    return %arg0, %c0_i32 : i32, i32
  }
  func.func @transform_2(%arg0: i32) -> (i32, i32) {
    %c0_i32 = arith.constant 0 : i32
    %c0_i32_0 = arith.constant 0 : i32
    %c0_i32_1 = arith.constant 0 : i32
    return %c0_i32, %c0_i32_0 : i32, i32
  }
  func.func @transform_3(%arg0: i32) -> (i32, i32) {
    %c0_i32 = arith.constant 0 : i32
    %c0_i32_0 = arith.constant 0 : i32
    %c0_i32_1 = arith.constant 0 : i32
    return %c0_i32, %c0_i32_0 : i32, i32
  }
  func.func @transform_4(%arg0: i32) -> (i32, i32) {
    %c0_i32 = arith.constant 0 : i32
    %c0_i32_0 = arith.constant 0 : i32
    %c0_i32_1 = arith.constant 0 : i32
    return %c0_i32, %c0_i32_0 : i32, i32
  }
  func.func @transform_5(%arg0: i32) -> (i32, i32) {
    %c0_i32 = arith.constant 0 : i32
    %c0_i32_0 = arith.constant 0 : i32
    %c0_i32_1 = arith.constant 0 : i32
    return %c0_i32, %c0_i32_0 : i32, i32
  }
  func.func @transform_6(%arg0: i32) -> (i32, i32) {
    %c0_i32 = arith.constant 0 : i32
    %c0_i32_0 = arith.constant 0 : i32
    %c0_i32_1 = arith.constant 0 : i32
    return %c0_i32, %c0_i32_0 : i32, i32
  }
  func.func @transform_7(%arg0: i32) -> (i32, i32) {
    %c0_i32 = arith.constant 0 : i32
    %c0_i32_0 = arith.constant 0 : i32
    %c0_i32_1 = arith.constant 0 : i32
    return %c0_i32, %c0_i32_0 : i32, i32
  }
  func.func @transform_8(%arg0: i32) -> (i32, i32) {
    %c0_i32 = arith.constant 0 : i32
    %c0_i32_0 = arith.constant 0 : i32
    return %c0_i32, %arg0 : i32, i32
  }
}

</mosaic_0001>

<llo_original>
// kernel: tpu_custom_call.1
$region0: #{tpu_custom_call.1}
  #allocation0 [shape = 'u32[]', space=smem, size = 0x4, offset = 0x4, fixed_abs, tag = 'smem constant byte address 0x4 - core index']
  #allocation1 [shape = 'u32[144,128]{1,0:T(1,128)}', space=vmem, size = 0x12000, scoped, tag = 'internal scratch']
  #allocation2 [shape = 'f32[8,28]{1,0:T(8,128)}', space=vmem, size = 0x1000, scoped, tag = 'scratch operand']
  #allocation3 [shape = 'f32[1,1]{1,0:T(1,128)S(1)}', space=vmem, size = 0x200, scoped, tag = 'scoped memory for tpu_custom_call.1']
  %s0 = inlined_call_operand.vmem [shape: f32[8,24], index: 0, kind: input, shape index: {}]
  %s1 = inlined_call_operand.vmem [shape: f32[8,4], index: 1, kind: input, shape index: {}]
  %s2 = inlined_call_operand.hbm [shape: bf16[28,256], index: 2, kind: input, shape index: {}]
  %s3 = inlined_call_operand.vmem [shape: f32[1,256], index: 3, kind: input, shape index: {}]
  %s4 = inlined_call_operand.hbm [shape: bf16[256,256], index: 4, kind: input, shape index: {}]
  %s5 = inlined_call_operand.vmem [shape: f32[1,256], index: 5, kind: input, shape index: {}]
  %s6 = inlined_call_operand.vmem [shape: bf16[8,256], index: 6, kind: input, shape index: {}]
  %s7 = inlined_call_operand.<no memory space> [shape: f32[1,1], index: 7, kind: input, shape index: {}]
  %s8 = inlined_call_operand.hbm [shape: f32[1,8], index: 8, kind: output, shape index: {}]
  %s9 = sld [smem:[#allocation0]]
  $region50: #{tpu_custom_call.1} parent=0
    _
  %s11 = ssub.s32 1, %s9
  %s12 = scalar_select 0, %s11, %s9
  %v13 = vstv %s7
  %14 = vst [vmem:[#allocation3] sm:$0x1] %v13
  $region1: #{tpu_custom_call.1} parent=0
    #allocation4 [shape = 'u8[16384]{0}', space=vmem, size = 0x4000, scoped, tag = 'input window, operand 2, single buffered']
    #allocation5 [shape = 's32[1]{0}', space=sflag, size = 0x4, scoped, tag = 'scoped memory for tpu_custom_call.1']
    #allocation6 [shape = 's32[1]{0}', space=sflag, size = 0x4, scoped, tag = 'scoped memory for tpu_custom_call.1']
    #allocation7 [shape = 'u8[131072]{0}', space=vmem, size = 0x20000, scoped, tag = 'input window, operand 4, single buffered']
    #allocation8 [shape = 's32[1]{0}', space=sflag, size = 0x4, scoped, tag = 'scoped memory for tpu_custom_call.1']
    #allocation9 [shape = 'u8[512]{0}', space=vmem, size = 0x400, scoped, tag = 'output window, operand 0, single buffered']
    %15 = vsyncpa [#allocation5], 0
    %16 = vsyncpa [#allocation8], 0
    %17 = vsyncpa [#allocation6], 0
    // Predicated region
    $region2: #{tpu_custom_call.1} parent=1 // pred_check
      _
    $region3: #{tpu_custom_call.1} parent=1 // pred_check_branch
      %19 = sbr.rel (0) target = $region5
    $region4: #{tpu_custom_call.1} parent=1 // pred_region
      _
    $region5: #{tpu_custom_call.1} parent=1 // pred_fallthru
      _
    // Predicated region
    $region6: #{tpu_custom_call.1} parent=1 // pred_check
      _
    $region7: #{tpu_custom_call.1} parent=1 // pred_check_branch
      %21 = sbr.rel (0) target = $region9
    $region8: #{tpu_custom_call.1} parent=1 // pred_region
      _
    $region9: #{tpu_custom_call.1} parent=1 // pred_fallthru
      _
    // Predicated region
    $region10: #{tpu_custom_call.1} parent=1 // pred_check
      _
    $region11: #{tpu_custom_call.1} parent=1 // pred_check_branch
      %23 = sbr.rel (0) target = $region13
    $region12: #{tpu_custom_call.1} parent=1 // pred_region
      %s25 = ssub.s32 512, 512
      %26 = vsyncadd [#allocation5], %s25
      %s27 = sshll.u32 [#allocation4], 4
      %s28 = int_to_ptr.vmem [resolvable:$true] %s27
      %33 = dma.hbm_to_vmem [thread:$0]  %s2, 512, %s28, [#allocation5], 128, 128, 8
    $region13: #{tpu_custom_call.1} parent=1 // pred_fallthru
      _
    // Predicated region
    $region14: #{tpu_custom_call.1} parent=1 // pred_check
      _
    $region15: #{tpu_custom_call.1} parent=1 // pred_check_branch
      %35 = sbr.rel (0) target = $region17
    $region16: #{tpu_custom_call.1} parent=1 // pred_region
      _
    $region17: #{tpu_custom_call.1} parent=1 // pred_fallthru
      _
    // Predicated region
    $region18: #{tpu_custom_call.1} parent=1 // pred_check
      _
    $region19: #{tpu_custom_call.1} parent=1 // pred_check_branch
      %37 = sbr.rel (0) target = $region21
    $region20: #{tpu_custom_call.1} parent=1 // pred_region
      %s39 = ssub.s32 4096, 4096
      %40 = vsyncadd [#allocation8], %s39
      %s41 = sshll.u32 [#allocation7], 4
      %s42 = int_to_ptr.vmem [resolvable:$true] %s41
      %47 = dma.hbm_to_vmem [thread:$0]  %s4, 4096, %s42, [#allocation8], 128, 128, 8
    $region21: #{tpu_custom_call.1} parent=1 // pred_fallthru
      _
    // Predicated region
    $region22: #{tpu_custom_call.1} parent=1 // pred_check
      _
    $region23: #{tpu_custom_call.1} parent=1 // pred_check_branch
      %49 = sbr.rel (0) target = $region25
    $region24: #{tpu_custom_call.1} parent=1 // pred_region
      _
    $region25: #{tpu_custom_call.1} parent=1 // pred_fallthru
      _
    // Predicated region
    $region26: #{tpu_custom_call.1} parent=1 // pred_check
      _
    $region27: #{tpu_custom_call.1} parent=1 // pred_check_branch
      %51 = sbr.rel (0) target = $region29
    $region28: #{tpu_custom_call.1} parent=1 // pred_region
      _
    $region29: #{tpu_custom_call.1} parent=1 // pred_fallthru
      _
    // Predicated region
    $region30: #{tpu_custom_call.1} parent=1 // pred_check
      _
    $region31: #{tpu_custom_call.1} parent=1 // pred_check_branch
      %53 = sbr.rel (0) target = $region33
    $region32: #{tpu_custom_call.1} parent=1 // pred_region
      _
    $region33: #{tpu_custom_call.1} parent=1 // pred_fallthru
      _
    // Predicated region
    $region34: #{tpu_custom_call.1} parent=1 // pred_check
      _
    $region35: #{tpu_custom_call.1} parent=1 // pred_check_branch
      %55 = sbr.rel (0) target = $region37
    $region36: #{tpu_custom_call.1} parent=1 // pred_region
      %56 = dma.done [#allocation5], 512
    $region37: #{tpu_custom_call.1} parent=1 // pred_fallthru
      _
    // Predicated region
    $region38: #{tpu_custom_call.1} parent=1 // pred_check
      _
    $region39: #{tpu_custom_call.1} parent=1 // pred_check_branch
      %58 = sbr.rel (0) target = $region41
    $region40: #{tpu_custom_call.1} parent=1 // pred_region
      %59 = dma.done [#allocation8], 4096
    $region41: #{tpu_custom_call.1} parent=1 // pred_fallthru
      _
    %v61 = vld [vmem:[%s0] sm:$0xff]
    %vm62 = vcmask 195584
    %63 = vst.msk [vmem:[#allocation2] sm:$0xff] %vm62, %v61
    %v64 = vld [vmem:[%s1] sm:$0xff]
    %66 = vrot.lane.b32.xlu0 %v64, 24
    %v67 = vpop.permute.xlu0 %66
    %vm69 = vcmask 228544
    %70 = vst.msk [vmem:[#allocation2] sm:$0xff] %vm69, %v67
    %v71 = vld [vmem:[#allocation2] sm:$0xff]
    %v72 = vpack.c.bf16 %v71, %v71
    %v73 = vld [vmem:[#allocation4] sm:$0xff]
    %v74 = vld [vmem:[#allocation4 + $0x8] sm:$0xff]
    %v75 = vld [vmem:[#allocation4 + $0x10] sm:$0xff]
    %v76 = vld [vmem:[#allocation4 + $0x18] sm:$0x33]
    %v77 = vld [vmem:[%s3] sm:$0x3]
    %v79 = vlaneseq
    %v80 = vshrl.u32 %v79, 7
    %v81 = vsub.s32 0, %v80
    %v82 = vrot.slane %v77, %v81
    %v83 = vlaneseq
    %v84 = vshrl.u32 %v83, 7
    %v85 = vsub.s32 1, %v84
    %v86 = vrot.slane %v77, %v85
    %v93 = vunpack.c.l.b16 %v73
    %v94 = vunpack.c.h.b16 %v73
    %v95 = vunpack.c.l.b16 %v74
    %v96 = vunpack.c.h.b16 %v74
    %v97 = vunpack.c.l.b16 %v75
    %v98 = vunpack.c.h.b16 %v75
    %v99 = vunpack.c.l.b16 %v76
    %v100 = vunpack.c.h.b16 %v76
    %v101 = vpack.c.b16 %v95, %v93
    %v102 = vpack.c.b16 %v96, %v94
    %v103 = vpack.c.b16 %v99, %v97
    %v104 = vpack.c.b16 %v100, %v98
    %vm107 = vcmask 228352
    %v109 = vsel %vm107, %v72, 0
    %vm111 = vcmask 1045504
    %v113 = vsel %vm111, %v103, 0
    %v116 = vsel %vm111, %v104, 0
    %118 = vmatprep.subr.bf16.mxu0 0
    %119 = vmatpush1.bf16.msra.mxu0 0
    %120 = vmatprep.subr.bf16.mxu0 0
    %121 = vmatpush1.bf16.msra.mxu0 0
    %122 = vmatprep.subr.bf16.mxu0 0
    %123 = vmatpush1.bf16.msra.mxu0 0
    %124 = vmatprep.subr.bf16.mxu0 0
    %125 = vmatpush1.bf16.msra.mxu0 0
    %126 = vmatprep.subr.bf16.mxu0 0
    %127 = vmatpush1.bf16.msra.mxu0 0
    %128 = vmatprep.subr.bf16.mxu0 0
    %129 = vmatpush1.bf16.msra.mxu0 0
    %130 = vmatprep.subr.bf16.mxu0 %v116
    %131 = vmatpush1.bf16.msra.mxu0 %v113
    %132 = vmatprep.subr.bf16.mxu0 %v102
    %133 = vmatpush1.bf16.msra.mxu0 %v101
    %134 = vmatprep.subr.bf16.mxu0 0
    %135 = vmatpush2.bf16.msra.mxu0 0
    %136 = vmatprep.subr.bf16.mxu0 0
    %137 = vmatpush2.bf16.msra.mxu0 0
    %138 = vmatprep.subr.bf16.mxu0 0
    %139 = vmatpush2.bf16.msra.mxu0 0
    %140 = vmatprep.subr.bf16.mxu0 0
    %141 = vmatpush2.bf16.msra.mxu0 0
    %142 = vmatprep.subr.bf16.mxu0 0
    %143 = vmatpush2.bf16.msra.mxu0 0
    %144 = vmatprep.subr.bf16.mxu0 0
    %145 = vmatpush2.bf16.msra.mxu0 0
    %146 = vmatprep.subr.bf16.mxu0 0
    %147 = vmatpush2.bf16.msra.mxu0 0
    %148 = vmatprep.subr.bf16.mxu0 0
    %149 = vmatpush2.bf16.msra.mxu0 0
    %150 = vmatprep.mubr.bf16.mxu0 0
    %151 = vmatmul.mubr.bf16.gmra.mxu0 %v109
    %v152 = vpop.f32.mrf.mxu0
    %v153 = vadd.f32 %v82, %v152
    %v154 = vpop.f32.mrf.mxu0
    %v155 = vadd.f32 %v86, %v154
    %v156 = vpop.f32.mrf.mxu0
    %v157 = vpop.f32.mrf.mxu0
    %158 = vdwg.mxu0
    %v159 = vmax.f32 %v153, 0.0
    %v160 = vmax.f32 %v155, 0.0
    %v161 = vpack.c.bf16 %v159, %v159
    %v162 = vpack.c.bf16 %v160, %v160
    %v163 = vld [vmem:[#allocation7] sm:$0xff]
    %v164 = vld [vmem:[#allocation7 + $0x8] sm:$0xff]
    %v165 = vld [vmem:[#allocation7 + $0x10] sm:$0xff]
    %v166 = vld [vmem:[#allocation7 + $0x18] sm:$0xff]
    %v167 = vld [vmem:[#allocation7 + $0x20] sm:$0xff]
    %v168 = vld [vmem:[#allocation7 + $0x28] sm:$0xff]
    %v169 = vld [vmem:[#allocation7 + $0x30] sm:$0xff]
    %v170 = vld [vmem:[#allocation7 + $0x38] sm:$0xff]
    %v171 = vld [vmem:[#allocation7 + $0x40] sm:$0xff]
    %v172 = vld [vmem:[#allocation7 + $0x48] sm:$0xff]
    %v173 = vld [vmem:[#allocation7 + $0x50] sm:$0xff]
    %v174 = vld [vmem:[#allocation7 + $0x58] sm:$0xff]
    %v175 = vld [vmem:[#allocation7 + $0x60] sm:$0xff]
    %v176 = vld [vmem:[#allocation7 + $0x68] sm:$0xff]
    %v177 = vld [vmem:[#allocation7 + $0x70] sm:$0xff]
    %v178 = vld [vmem:[#allocation7 + $0x78] sm:$0xff]
    %v179 = vld [vmem:[#allocation7 + $0x80] sm:$0xff]
    %v180 = vld [vmem:[#allocation7 + $0x88] sm:$0xff]
    %v181 = vld [vmem:[#allocation7 + $0x90] sm:$0xff]
    %v182 = vld [vmem:[#allocation7 + $0x98] sm:$0xff]
    %v183 = vld [vmem:[#allocation7 + $0xa0] sm:$0xff]
    %v184 = vld [vmem:[#allocation7 + $0xa8] sm:$0xff]
    %v185 = vld [vmem:[#allocation7 + $0xb0] sm:$0xff]
    %v186 = vld [vmem:[#allocation7 + $0xb8] sm:$0xff]
    %v187 = vld [vmem:[#allocation7 + $0xc0] sm:$0xff]
    %v188 = vld [vmem:[#allocation7 + $0xc8] sm:$0xff]
    %v189 = vld [vmem:[#allocation7 + $0xd0] sm:$0xff]
    %v190 = vld [vmem:[#allocation7 + $0xd8] sm:$0xff]
    %v191 = vld [vmem:[#allocation7 + $0xe0] sm:$0xff]
    %v192 = vld [vmem:[#allocation7 + $0xe8] sm:$0xff]
    %v193 = vld [vmem:[#allocation7 + $0xf0] sm:$0xff]
    %v194 = vld [vmem:[#allocation7 + $0xf8] sm:$0xff]
    %v195 = vld [vmem:[%s5] sm:$0x3]
    %v197 = vlaneseq
    %v198 = vshrl.u32 %v197, 7
    %v199 = vsub.s32 0, %v198
    %v200 = vrot.slane %v195, %v199
    %v201 = vlaneseq
    %v202 = vshrl.u32 %v201, 7
    %v203 = vsub.s32 1, %v202
    %v204 = vrot.slane %v195, %v203
    %v239 = vunpack.c.l.b16 %v163
    %v240 = vunpack.c.h.b16 %v163
    %v241 = vunpack.c.l.b16 %v164
    %v242 = vunpack.c.h.b16 %v164
    %v243 = vunpack.c.l.b16 %v165
    %v244 = vunpack.c.h.b16 %v165
    %v245 = vunpack.c.l.b16 %v166
    %v246 = vunpack.c.h.b16 %v166
    %v247 = vunpack.c.l.b16 %v167
    %v248 = vunpack.c.h.b16 %v167
    %v249 = vunpack.c.l.b16 %v168
    %v250 = vunpack.c.h.b16 %v168
    %v251 = vunpack.c.l.b16 %v169
    %v252 = vunpack.c.h.b16 %v169
    %v253 = vunpack.c.l.b16 %v170
    %v254 = vunpack.c.h.b16 %v170
    %v255 = vunpack.c.l.b16 %v171
    %v256 = vunpack.c.h.b16 %v171
    %v257 = vunpack.c.l.b16 %v172
    %v258 = vunpack.c.h.b16 %v172
    %v259 = vunpack.c.l.b16 %v173
    %v260 = vunpack.c.h.b16 %v173
    %v261 = vunpack.c.l.b16 %v174
    %v262 = vunpack.c.h.b16 %v174
    %v263 = vunpack.c.l.b16 %v175
    %v264 = vunpack.c.h.b16 %v175
    %v265 = vunpack.c.l.b16 %v176
    %v266 = vunpack.c.h.b16 %v176
    %v267 = vunpack.c.l.b16 %v177
    %v268 = vunpack.c.h.b16 %v177
    %v269 = vunpack.c.l.b16 %v178
    %v270 = vunpack.c.h.b16 %v178
    %v271 = vunpack.c.l.b16 %v179
    %v272 = vunpack.c.h.b16 %v179
    %v273 = vunpack.c.l.b16 %v180
    %v274 = vunpack.c.h.b16 %v180
    %v275 = vunpack.c.l.b16 %v181
    %v276 = vunpack.c.h.b16 %v181
    %v277 = vunpack.c.l.b16 %v182
    %v278 = vunpack.c.h.b16 %v182
    %v279 = vunpack.c.l.b16 %v183
    %v280 = vunpack.c.h.b16 %v183
    %v281 = vunpack.c.l.b16 %v184
    %v282 = vunpack.c.h.b16 %v184
    %v283 = vunpack.c.l.b16 %v185
    %v284 = vunpack.c.h.b16 %v185
    %v285 = vunpack.c.l.b16 %v186
    %v286 = vunpack.c.h.b16 %v186
    %v287 = vunpack.c.l.b16 %v187
    %v288 = vunpack.c.h.b16 %v187
    %v289 = vunpack.c.l.b16 %v188
    %v290 = vunpack.c.h.b16 %v188
    %v291 = vunpack.c.l.b16 %v189
    %v292 = vunpack.c.h.b16 %v189
    %v293 = vunpack.c.l.b16 %v190
    %v294 = vunpack.c.h.b16 %v190
    %v295 = vunpack.c.l.b16 %v191
    %v296 = vunpack.c.h.b16 %v191
    %v297 = vunpack.c.l.b16 %v192
    %v298 = vunpack.c.h.b16 %v192
    %v299 = vunpack.c.l.b16 %v193
    %v300 = vunpack.c.h.b16 %v193
    %v301 = vunpack.c.l.b16 %v194
    %v302 = vunpack.c.h.b16 %v194
    %v303 = vpack.c.b16 %v241, %v239
    %v304 = vpack.c.b16 %v242, %v240
    %v305 = vpack.c.b16 %v245, %v243
    %v306 = vpack.c.b16 %v246, %v244
    %v307 = vpack.c.b16 %v249, %v247
    %v308 = vpack.c.b16 %v250, %v248
    %v309 = vpack.c.b16 %v253, %v251
    %v310 = vpack.c.b16 %v254, %v252
    %v311 = vpack.c.b16 %v257, %v255
    %v312 = vpack.c.b16 %v258, %v256
    %v313 = vpack.c.b16 %v261, %v259
    %v314 = vpack.c.b16 %v262, %v260
    %v315 = vpack.c.b16 %v265, %v263
    %v316 = vpack.c.b16 %v266, %v264
    %v317 = vpack.c.b16 %v269, %v267
    %v318 = vpack.c.b16 %v270, %v268
    %v319 = vpack.c.b16 %v273, %v271
    %v320 = vpack.c.b16 %v274, %v272
    %v321 = vpack.c.b16 %v277, %v275
    %v322 = vpack.c.b16 %v278, %v276
    %v323 = vpack.c.b16 %v281, %v279
    %v324 = vpack.c.b16 %v282, %v280
    %v325 = vpack.c.b16 %v285, %v283
    %v326 = vpack.c.b16 %v286, %v284
    %v327 = vpack.c.b16 %v289, %v287
    %v328 = vpack.c.b16 %v290, %v288
    %v329 = vpack.c.b16 %v293, %v291
    %v330 = vpack.c.b16 %v294, %v292
    %v331 = vpack.c.b16 %v297, %v295
    %v332 = vpack.c.b16 %v298, %v296
    %v333 = vpack.c.b16 %v301, %v299
    %v334 = vpack.c.b16 %v302, %v300
    %367 = vmatprep.subr.bf16.mxu0 %v318
    %368 = vmatpush1.bf16.msra.mxu0 %v317
    %369 = vmatprep.subr.bf16.mxu0 %v316
    %370 = vmatpush1.bf16.msra.mxu0 %v315
    %371 = vmatprep.subr.bf16.mxu0 %v314
    %372 = vmatpush1.bf16.msra.mxu0 %v313
    %373 = vmatprep.subr.bf16.mxu0 %v312
    %374 = vmatpush1.bf16.msra.mxu0 %v311
    %375 = vmatprep.subr.bf16.mxu0 %v310
    %376 = vmatpush1.bf16.msra.mxu0 %v309
    %377 = vmatprep.subr.bf16.mxu0 %v308
    %378 = vmatpush1.bf16.msra.mxu0 %v307
    %379 = vmatprep.subr.bf16.mxu0 %v306
    %380 = vmatpush1.bf16.msra.mxu0 %v305
    %381 = vmatprep.subr.bf16.mxu0 %v304
    %382 = vmatpush1.bf16.msra.mxu0 %v303
    %383 = vmatprep.subr.bf16.mxu0 %v334
    %384 = vmatpush2.bf16.msra.mxu0 %v333
    %385 = vmatprep.subr.bf16.mxu0 %v332
    %386 = vmatpush2.bf16.msra.mxu0 %v331
    %387 = vmatprep.subr.bf16.mxu0 %v330
    %388 = vmatpush2.bf16.msra.mxu0 %v329
    %389 = vmatprep.subr.bf16.mxu0 %v328
    %390 = vmatpush2.bf16.msra.mxu0 %v327
    %391 = vmatprep.subr.bf16.mxu0 %v326
    %392 = vmatpush2.bf16.msra.mxu0 %v325
    %393 = vmatprep.subr.bf16.mxu0 %v324
    %394 = vmatpush2.bf16.msra.mxu0 %v323
    %395 = vmatprep.subr.bf16.mxu0 %v322
    %396 = vmatpush2.bf16.msra.mxu0 %v321
    %397 = vmatprep.subr.bf16.mxu0 %v320
    %398 = vmatpush2.bf16.msra.mxu0 %v319
    %399 = vmatprep.mubr.bf16.mxu0 %v162
    %400 = vmatmul.mubr.bf16.gmra.mxu0 %v161
    %v401 = vpop.f32.mrf.mxu0
    %v402 = vadd.f32 %v200, %v401
    %v403 = vpop.f32.mrf.mxu0
    %v404 = vadd.f32 %v204, %v403
    %v405 = vpop.f32.mrf.mxu0
    %v406 = vpop.f32.mrf.mxu0
    %407 = vdwg.mxu0
    %v408 = vmax.f32 %v402, 0.0
    %v409 = vmax.f32 %v404, 0.0
    %v410 = vld [vmem:[%s6] sm:$0xff]
    %v411 = vpack.c.bf16 %v408, %v408
    %v412 = vpack.c.bf16 %v409, %v409
    %v414 = vunpack.c.l.b16 %v410
    %v415 = vunpack.c.h.b16 %v410
    %v416 = vpack.c.b16 %v414, %v414
    %v417 = vpack.c.b16 %v415, %v415
    %420 = vmatprep.subr.bf16.mxu0 0
    %421 = vmatpush1.bf16.xpose.msra.mxu0 0
    %422 = vmatprep.subr.bf16.mxu0 0
    %423 = vmatpush1.bf16.xpose.msra.mxu0 0
    %424 = vmatprep.subr.bf16.mxu0 0
    %425 = vmatpush1.bf16.xpose.msra.mxu0 0
    %426 = vmatprep.subr.bf16.mxu0 0
    %427 = vmatpush1.bf16.xpose.msra.mxu0 0
    %428 = vmatprep.subr.bf16.mxu0 0
    %429 = vmatpush1.bf16.xpose.msra.mxu0 0
    %430 = vmatprep.subr.bf16.mxu0 0
    %431 = vmatpush1.bf16.xpose.msra.mxu0 0
    %432 = vmatprep.subr.bf16.mxu0 0
    %433 = vmatpush1.bf16.xpose.msra.mxu0 0
    %434 = vmatprep.subr.bf16.mxu0 %v412
    %435 = vmatpush1.bf16.xpose.msra.mxu0 %v411
    %436 = vmatprep.subr.bf16.mxu0 0
    %437 = vmatpush2.bf16.xpose.msra.mxu0 0
    %438 = vmatprep.subr.bf16.mxu0 0
    %439 = vmatpush2.bf16.xpose.msra.mxu0 0
    %440 = vmatprep.subr.bf16.mxu0 0
    %441 = vmatpush2.bf16.xpose.msra.mxu0 0
    %442 = vmatprep.subr.bf16.mxu0 0
    %443 = vmatpush2.bf16.xpose.msra.mxu0 0
    %444 = vmatprep.subr.bf16.mxu0 0
    %445 = vmatpush2.bf16.xpose.msra.mxu0 0
    %446 = vmatprep.subr.bf16.mxu0 0
    %447 = vmatpush2.bf16.xpose.msra.mxu0 0
    %448 = vmatprep.subr.bf16.mxu0 0
    %449 = vmatpush2.bf16.xpose.msra.mxu0 0
    %450 = vmatprep.subr.bf16.mxu0 0
    %451 = vmatpush2.bf16.xpose.msra.mxu0 0
    %452 = vmatprep.mubr.bf16.mxu0 %v417
    %453 = vmatmul.mubr.bf16.gmra.mxu0 %v416
    %v454 = vpop.f32.mrf.mxu0
    %v455 = vadd.f32 0.0, %v454
    %v456 = vpop.f32.mrf.mxu0
    %v457 = vpop.f32.mrf.mxu0
    %v458 = vpop.f32.mrf.mxu0
    %459 = vdwg.mxu0
    %v460 = vld [vmem:[#allocation3] sm:$0x1]
    %462 = vset.pattern.permute.xlu0 0
    %463 = vperm.xlu0 %462, %v460
    %v464 = vpop.permute.xlu0 %463
    %v466 = vlaneseq
    %v467 = vshrl.u32 %v466, 7
    %v468 = vsub.s32 0, %v467
    %v469 = vrot.slane %v464, %v468
    %v470 = vadd.f32 %v455, %v469
    %vm471 = vcmask 57344
    %472 = vst.msk [vmem:[#allocation9] sm:$0x1] %vm471, %v470
    // Predicated region
    $region42: #{tpu_custom_call.1} parent=1 // pred_check
      _
    $region43: #{tpu_custom_call.1} parent=1 // pred_check_branch
      %474 = sbr.rel (0) target = $region45
    $region44: #{tpu_custom_call.1} parent=1 // pred_region
      %s476 = ssub.s32 16, 16
      %477 = vsyncadd [#allocation6], %s476
      %s479 = sshll.u32 [#allocation9], 4
      %s480 = int_to_ptr.vmem [resolvable:$true] %s479
      %482 = dma.vmem_to_hbm [thread:$0]  %s480, 16, %s8, [#allocation6]
    $region45: #{tpu_custom_call.1} parent=1 // pred_fallthru
      _
    // Predicated region
    $region46: #{tpu_custom_call.1} parent=1 // pred_check
      _
    $region47: #{tpu_custom_call.1} parent=1 // pred_check_branch
      %484 = sbr.rel (0) target = $region49
    $region48: #{tpu_custom_call.1} parent=1 // pred_region
      %485 = dma.done [#allocation6], 16
    $region49: #{tpu_custom_call.1} parent=1 // pred_fallthru
      _
    %486 = vsyncpa [#allocation5], 1
    %487 = vsyncpa [#allocation8], 1
    %488 = vsyncpa [#allocation6], 1

</llo_original>
